<compile_context>
chip_gen: v7x
topology: tpu7x:2x2x1
jax: 0.10.0
libtpu: 0.0.40
codegen_flags: <defaults>
</compile_context>

<pallas_src>
import functools

import jax
import jax.numpy as jnp
from jax.experimental import pallas as pl
from jax.experimental.pallas import tpu as pltpu


def _thresholder_kernel(x_ref, o_ref, *, c1, m2, c2, m3, c3):
    x = x_ref[...].astype(jnp.float32)
    y = jnp.maximum(x + c1, 0.0)          # arelu1 (m == 1, multiply elided)
    y = jnp.maximum(m2 * y + c2, 0.0)     # arelu2
    y = jnp.maximum(m3 * y + c3, 0.0)     # arelu3
    o_ref[...] = y.astype(o_ref.dtype)


def thresholder(x, b=0.0, eps=1e-6):
    """Applies Thresholder elementwise. x: float array of any shape."""
    orig_shape = x.shape
    orig_dtype = x.dtype
    total = x.size
    lane = 128
    itemsize = jnp.dtype(orig_dtype).itemsize

    flat = x.reshape(-1)
    pad = (-total) % lane
    if pad:
        # TODO(synk): ragged tail (total % 128 != 0) still pays one extra pass
        # over the tensor for the pad/slice; aligned sizes take the zero-copy
        # reshape path below.
        flat = jnp.pad(flat, (0, pad))
    rows_total = flat.size // lane
    x2d = flat.reshape(rows_total, lane)

    # ~1 MiB tile per grid step; multiple of 32 sublanes for packed dtypes.
    target_rows = max(32, ((1 << 20) // (lane * itemsize)) // 32 * 32)
    block_rows = rows_total if rows_total <= target_rows else target_rows
    grid = (pl.cdiv(rows_total, block_rows),)

    kernel = functools.partial(
        _thresholder_kernel,
        c1=float(-(b + eps)), m2=-1000.0, c2=1.0, m3=-1000.0, c3=1.0,
    )

    out2d = pl.pallas_call(
        kernel,
        out_shape=jax.ShapeDtypeStruct((rows_total, lane), orig_dtype),
        grid_spec=pltpu.PrefetchScalarGridSpec(
            num_scalar_prefetch=0,
            grid=grid,
            in_specs=[pl.BlockSpec((block_rows, lane), lambda i: (i, 0))],
            out_specs=pl.BlockSpec((block_rows, lane), lambda i: (i, 0)),
        ),
        compiler_params=pltpu.CompilerParams(
            dimension_semantics=("parallel",)),
        cost_estimate=pl.CostEstimate(
            flops=6 * total,
            transcendentals=0,
            bytes_accessed=2 * total * itemsize),
    )(x2d)

    if pad:
        return out2d.reshape(-1)[:total].reshape(orig_shape)
    return out2d.reshape(orig_shape)


def _reference(x, b=0.0, eps=1e-6):
    xf = x.astype(jnp.float32)
    y = jnp.maximum(xf - (b + eps), 0.0)
    y = jnp.maximum(-1000.0 * y + 1.0, 0.0)
    y = jnp.maximum(-1000.0 * y + 1.0, 0.0)
    return y.astype(x.dtype)


if __name__ == "__main__":
    b, eps = 0.0, 1e-6
    t = b + eps

    def make_input(key, shape, scale=0.01):
        x = jax.random.normal(key, shape, dtype=jnp.float32) * scale
        # Keep deterministic test points out of the ill-conditioned transition
        # band just above (b+eps): the function's slope reaches 1e6 there, so
        # benign FMA/rounding differences vs. the eager reference would get
        # amplified far beyond any reasonable tolerance.
        in_band = (x > t) & (x < t + 2e-3)
        return jnp.where(in_band, x + 3e-3, x)

    key = jax.random.PRNGKey(0)
    k0, k1 = jax.random.split(key)

    # Lane-aligned NCHW case (2*4*16*16 = 2048 elements, multiple of 128).
    x0 = make_input(k0, (2, 4, 16, 16))
    out0 = jax.block_until_ready(thresholder(x0, b=b, eps=eps))
    ref0 = _reference(x0, b=b, eps=eps)
    assert out0.shape == x0.shape and out0.dtype == x0.dtype
    assert jnp.allclose(out0, ref0, atol=1e-5, rtol=1e-5), "aligned case mismatch"

    # Ragged-size case (3*5*7*11 = 1155 elements) exercises the padded path.
    x1 = make_input(k1, (3, 5, 7, 11))
    out1 = jax.block_until_ready(thresholder(x1, b=b, eps=eps))
    ref1 = _reference(x1, b=b, eps=eps)
    assert out1.shape == x1.shape and out1.dtype == x1.dtype
    assert jnp.allclose(out1, ref1, atol=1e-5, rtol=1e-5), "ragged case mismatch"

    print("KERNEL_OK")
</pallas_src>

<mosaic_0001>
module attributes {stable_mosaic.version = 11 : i64} {
  func.func @_thresholder_kernel(%arg0: i32, %arg1: memref<16x128xf32, #tpu.memory_space<vmem>>, %arg2: memref<16x128xf32, #tpu.memory_space<vmem>>) attributes {dimension_semantics = [#tpu.dimension_semantics<parallel>], iteration_bounds = array<i64: 1>, scalar_prefetch = 0 : i64, scratch_operands = 0 : i64, tpu.core_type = #tpu.core_type<tc>, window_params = [{transform_indices = @transform_0, window_bounds = array<i64: 16, 128>}, {transform_indices = @transform_1, window_bounds = array<i64: 16, 128>}]} {
    %c0 = arith.constant 0 : index
    %c0_0 = arith.constant 0 : index
    %0 = vector.load %arg1[%c0, %c0_0] : memref<16x128xf32, #tpu.memory_space<vmem>>, vector<16x128xf32>
    %cst = arith.constant -9.99999997E-7 : f32
    %1 = vector.broadcast %cst : f32 to vector<16x128xf32>
    %2 = arith.addf %0, %1 : vector<16x128xf32>
    %cst_1 = arith.constant 0.000000e+00 : f32
    %3 = vector.broadcast %cst_1 : f32 to vector<16x128xf32>
    %4 = arith.maximumf %2, %3 : vector<16x128xf32>
    %cst_2 = arith.constant -1.000000e+03 : f32
    %5 = vector.broadcast %cst_2 : f32 to vector<16x128xf32>
    %6 = arith.mulf %5, %4 : vector<16x128xf32>
    %cst_3 = arith.constant 1.000000e+00 : f32
    %7 = vector.broadcast %cst_3 : f32 to vector<16x128xf32>
    %8 = arith.addf %6, %7 : vector<16x128xf32>
    %cst_4 = arith.constant 0.000000e+00 : f32
    %9 = vector.broadcast %cst_4 : f32 to vector<16x128xf32>
    %10 = arith.maximumf %8, %9 : vector<16x128xf32>
    %cst_5 = arith.constant -1.000000e+03 : f32
    %11 = vector.broadcast %cst_5 : f32 to vector<16x128xf32>
    %12 = arith.mulf %11, %10 : vector<16x128xf32>
    %cst_6 = arith.constant 1.000000e+00 : f32
    %13 = vector.broadcast %cst_6 : f32 to vector<16x128xf32>
    %14 = arith.addf %12, %13 : vector<16x128xf32>
    %cst_7 = arith.constant 0.000000e+00 : f32
    %15 = vector.broadcast %cst_7 : f32 to vector<16x128xf32>
    %16 = arith.maximumf %14, %15 : vector<16x128xf32>
    %c0_8 = arith.constant 0 : index
    %c0_9 = arith.constant 0 : index
    %17 = vector.load %arg2[%c0_8, %c0_9] : memref<16x128xf32, #tpu.memory_space<vmem>>, vector<16x128xf32>
    tpu.vector_store %arg2[%c0_8, %c0_9], %16 {strides = array<i32>} : memref<16x128xf32, #tpu.memory_space<vmem>>, vector<16x128xf32>,
    return
  }
  func.func @transform_0(%arg0: i32) -> (i32, i32) {
    %c0_i32 = arith.constant 0 : i32
    %c0_i32_0 = arith.constant 0 : i32
    return %arg0, %c0_i32 : i32, i32
  }
  func.func @transform_1(%arg0: i32) -> (i32, i32) {
    %c0_i32 = arith.constant 0 : i32
    %c0_i32_0 = arith.constant 0 : i32
    return %arg0, %c0_i32 : i32, i32
  }
}

</mosaic_0001>

<llo_original>
// kernel: tpu_custom_call.1
$region0: #{tpu_custom_call.1}
  #allocation0 [shape = 'u32[]', space=smem, size = 0x4, offset = 0x4, fixed_abs, tag = 'smem constant byte address 0x4 - core index']
  #allocation1 [shape = 'u32[144,128]{1,0:T(1,128)}', space=vmem, size = 0x12000, scoped, tag = 'internal scratch']
  %s0 = inlined_call_operand.hbm [shape: f32[16,128], index: 0, kind: input, shape index: {}]
  %s1 = inlined_call_operand.hbm [shape: f32[16,128], index: 1, kind: output, shape index: {}]
  %s2 = sld [smem:[#allocation0]]
  $region18: #{tpu_custom_call.1} parent=0
    _
  %s4 = ssub.s32 1, %s2
  %s5 = scalar_select 0, %s4, %s2
  $region1: #{tpu_custom_call.1} parent=0
    #allocation2 [shape = 'u8[8192]{0}', space=vmem, size = 0x2000, scoped, tag = 'input window, operand 0, single buffered']
    #allocation3 [shape = 's32[1]{0}', space=sflag, size = 0x4, scoped, tag = 'scoped memory for tpu_custom_call.1']
    #allocation4 [shape = 's32[1]{0}', space=sflag, size = 0x4, scoped, tag = 'scoped memory for tpu_custom_call.1']
    #allocation5 [shape = 'u8[8192]{0}', space=vmem, size = 0x2000, scoped, tag = 'output window, operand 0, single buffered']
    %6 = vsyncpa [#allocation3], 0
    %7 = vsyncpa [#allocation4], 0
    // Predicated region
    $region2: #{tpu_custom_call.1} parent=1 // pred_check
      _
    $region3: #{tpu_custom_call.1} parent=1 // pred_check_branch
      %9 = sbr.rel (0) target = $region5
    $region4: #{tpu_custom_call.1} parent=1 // pred_region
      %s11 = ssub.s32 256, 256
      %12 = vsyncadd [#allocation3], %s11
      %s13 = sshll.u32 [#allocation2], 4
      %s14 = int_to_ptr.vmem [resolvable:$true] %s13
      %19 = dma.hbm_to_vmem [thread:$0]  %s0, 256, %s14, [#allocation3], 128, 128, 8
    $region5: #{tpu_custom_call.1} parent=1 // pred_fallthru
      _
    // Predicated region
    $region6: #{tpu_custom_call.1} parent=1 // pred_check
      _
    $region7: #{tpu_custom_call.1} parent=1 // pred_check_branch
      %21 = sbr.rel (0) target = $region9
    $region8: #{tpu_custom_call.1} parent=1 // pred_region
      %22 = dma.done [#allocation3], 256
    $region9: #{tpu_custom_call.1} parent=1 // pred_fallthru
      _
    %v23 = vld [vmem:[#allocation2] sm:$0xff]
    %v24 = vld [vmem:[#allocation2 + $0x8] sm:$0xff]
    %v25 = vadd.f32 %v23, -1e-06
    %v26 = vadd.f32 %v24, -1e-06
    %v27 = vmax.f32 %v25, 0.0
    %v28 = vmax.f32 %v26, 0.0
    %v29 = vmul.f32 %v27, -1000.0
    %v30 = vmul.f32 %v28, -1000.0
    %v31 = vadd.f32 %v29, 1.0
    %v32 = vadd.f32 %v30, 1.0
    %v33 = vmax.f32 %v31, 0.0
    %v34 = vmax.f32 %v32, 0.0
    %v35 = vmul.f32 %v33, -1000.0
    %v36 = vmul.f32 %v34, -1000.0
    %v37 = vadd.f32 %v35, 1.0
    %v38 = vadd.f32 %v36, 1.0
    %v39 = vmax.f32 %v37, 0.0
    %v40 = vmax.f32 %v38, 0.0
    %41 = vst [vmem:[#allocation5] sm:$0xff] %v39
    %42 = vst [vmem:[#allocation5 + $0x8] sm:$0xff] %v40
    // Predicated region
    $region10: #{tpu_custom_call.1} parent=1 // pred_check
      _
    $region11: #{tpu_custom_call.1} parent=1 // pred_check_branch
      %44 = sbr.rel (0) target = $region13
    $region12: #{tpu_custom_call.1} parent=1 // pred_region
      %s46 = ssub.s32 256, 256
      %47 = vsyncadd [#allocation4], %s46
      %s48 = sshll.u32 [#allocation5], 4
      %s49 = int_to_ptr.vmem [resolvable:$true] %s48
      %54 = dma.vmem_to_hbm [thread:$0]  %s49, 256, %s1, [#allocation4], 128, 128, 8
    $region13: #{tpu_custom_call.1} parent=1 // pred_fallthru
      _
    // Predicated region
    $region14: #{tpu_custom_call.1} parent=1 // pred_check
      _
    $region15: #{tpu_custom_call.1} parent=1 // pred_check_branch
      %56 = sbr.rel (0) target = $region17
    $region16: #{tpu_custom_call.1} parent=1 // pred_region
      %57 = dma.done [#allocation4], 256
    $region17: #{tpu_custom_call.1} parent=1 // pred_fallthru
      _
    %58 = vsyncpa [#allocation3], 1
    %59 = vsyncpa [#allocation4], 1

</llo_original>
